<compile_context>
chip_gen: v7x
topology: tpu7x:2x2x1
jax: 0.10.0
libtpu: 0.0.40
codegen_flags: <defaults>
</compile_context>

<pallas_src>
import functools
import math

import jax
import jax.numpy as jnp
from jax.experimental import pallas as pl
from jax.experimental.pallas import tpu as pltpu


# ----------------------------------------------------------------------------
# helpers
# ----------------------------------------------------------------------------
def _round_up(n, m):
    return ((n + m - 1) // m) * m


def _pick_tile(n, pref, minimum=8):
    """Largest tile <= pref (halving) that divides n; falls back to n."""
    t = pref
    while t >= minimum:
        if n % t == 0:
            return t
        t //= 2
    return n


def get_slopes(n):
    """ALiBi-style slopes, same math as models/bam.py."""
    def power_of_2(m):
        start = 2 ** (-(2 ** (-(math.log2(m) - 3))))
        return [start * (start ** i) for i in range(m)]

    if math.log2(n).is_integer():
        return power_of_2(n)
    closest = 2 ** math.floor(math.log2(n))
    return power_of_2(closest) + get_slopes(2 * closest)[0::2][: n - closest]


def attention_prior(seqlen, shape_p, log_scale_p, loc_p, eps=1e-5):
    """Pure-JAX AttentionPrior.forward (used only for the reference check)."""
    pos = jnp.arange(seqlen, dtype=jnp.float32)
    b = (pos[None, :] - pos[:, None])[None, None]            # (1,1,S,S)
    b = b - (jnp.exp(loc_p) - jnp.exp(-loc_p))                # (1,H,S,S)
    return -((jnp.abs(b) + eps) ** shape_p) * jnp.exp(log_scale_p)


# ----------------------------------------------------------------------------
# Fused Q/K/V projection: one pass over x, three MXU matmuls per step
# ----------------------------------------------------------------------------
def _qkv_proj_kernel(x_ref, wq_ref, wk_ref, wv_ref, q_ref, k_ref, v_ref,
                     qacc, kacc, vacc):
    @pl.when(pl.program_id(2) == 0)
    def _():
        qacc[...] = jnp.zeros_like(qacc)
        kacc[...] = jnp.zeros_like(kacc)
        vacc[...] = jnp.zeros_like(vacc)

    x = x_ref[...]
    qacc[...] += jnp.dot(x, wq_ref[...], preferred_element_type=jnp.float32)
    kacc[...] += jnp.dot(x, wk_ref[...], preferred_element_type=jnp.float32)
    vacc[...] += jnp.dot(x, wv_ref[...], preferred_element_type=jnp.float32)

    @pl.when(pl.program_id(2) == pl.num_programs(2) - 1)
    def _():
        q_ref[...] = qacc[...].astype(q_ref.dtype)
        k_ref[...] = kacc[...].astype(k_ref.dtype)
        v_ref[...] = vacc[...].astype(v_ref.dtype)


def qkv_projection(x, wq, wk, wv, *, tm=256, tn=256, tk=256):
    M, K = x.shape
    N = wq.shape[1]
    assert wq.shape == wk.shape == wv.shape == (K, N), \
        "fused QKV assumes n_kv_heads == n_heads (matches the reference forward)"
    tm, tn, tk = _pick_tile(M, tm), _pick_tile(N, tn), _pick_tile(K, tk)
    grid = (M // tm, N // tn, K // tk)
    w_spec = pl.BlockSpec((tk, tn), lambda i, j, k: (k, j))
    o_spec = pl.BlockSpec((tm, tn), lambda i, j, k: (i, j))
    out_sds = jax.ShapeDtypeStruct((M, N), x.dtype)
    return pl.pallas_call(
        _qkv_proj_kernel,
        out_shape=(out_sds, out_sds, out_sds),
        grid_spec=pltpu.PrefetchScalarGridSpec(
            num_scalar_prefetch=0,
            grid=grid,
            in_specs=[pl.BlockSpec((tm, tk), lambda i, j, k: (i, k)),
                      w_spec, w_spec, w_spec],
            out_specs=(o_spec, o_spec, o_spec),
            scratch_shapes=[pltpu.VMEM((tm, tn), jnp.float32),
                            pltpu.VMEM((tm, tn), jnp.float32),
                            pltpu.VMEM((tm, tn), jnp.float32)],
        ),
        compiler_params=pltpu.CompilerParams(
            dimension_semantics=("parallel", "parallel", "arbitrary")),
    )(x, wq, wk, wv)


# ----------------------------------------------------------------------------
# Plain tiled matmul (output projection wo)
# ----------------------------------------------------------------------------
def _matmul_kernel(x_ref, w_ref, o_ref, acc_ref):
    @pl.when(pl.program_id(2) == 0)
    def _():
        acc_ref[...] = jnp.zeros_like(acc_ref)

    acc_ref[...] += jnp.dot(x_ref[...], w_ref[...],
                            preferred_element_type=jnp.float32)

    @pl.when(pl.program_id(2) == pl.num_programs(2) - 1)
    def _():
        o_ref[...] = acc_ref[...].astype(o_ref.dtype)


def matmul(x, w, *, tm=256, tn=256, tk=512):
    M, K = x.shape
    K2, N = w.shape
    assert K == K2, (x.shape, w.shape)
    tm, tn, tk = _pick_tile(M, tm), _pick_tile(N, tn), _pick_tile(K, tk)
    grid = (M // tm, N // tn, K // tk)
    return pl.pallas_call(
        _matmul_kernel,
        out_shape=jax.ShapeDtypeStruct((M, N), x.dtype),
        grid_spec=pltpu.PrefetchScalarGridSpec(
            num_scalar_prefetch=0,
            grid=grid,
            in_specs=[
                pl.BlockSpec((tm, tk), lambda i, j, k: (i, k)),
                pl.BlockSpec((tk, tn), lambda i, j, k: (k, j)),
            ],
            out_specs=pl.BlockSpec((tm, tn), lambda i, j, k: (i, j)),
            scratch_shapes=[pltpu.VMEM((tm, tn), jnp.float32)],
        ),
        compiler_params=pltpu.CompilerParams(
            dimension_semantics=("parallel", "parallel", "arbitrary")),
    )(x, w)


# ----------------------------------------------------------------------------
# Flash-attention core: in-kernel prior + causal mask, online softmax
# ----------------------------------------------------------------------------
def _flash_attn_kernel(*refs, sm_scale, seqlen, tq, tk, causal,
                       has_prior, has_mask, mask_keys, prior_eps):
    i = 0
    prior_ref = None
    if has_prior:
        prior_ref = refs[i]
        i += 1
    q_ref, k_ref, v_ref = refs[i], refs[i + 1], refs[i + 2]
    i += 3
    mask_ref = None
    if has_mask:
        mask_ref = refs[i]
        i += 1
    o_ref = refs[i]
    m_sc, l_sc, acc_sc = refs[i + 1], refs[i + 2], refs[i + 3]

    h = pl.program_id(1)
    qi = pl.program_id(2)
    ki = pl.program_id(3)

    @pl.when(ki == 0)
    def _():
        m_sc[...] = jnp.full_like(m_sc, -jnp.inf)
        l_sc[...] = jnp.zeros_like(l_sc)
        acc_sc[...] = jnp.zeros_like(acc_sc)

    def compute():
        q = q_ref[0, 0]          # (tq, D)
        k = k_ref[0, 0]          # (tk, D)
        v = v_ref[0, 0]          # (tk, D)

        # scores in f32 on the MXU; contract on D so K is consumed in its
        # native layout (no XLU transpose per step).
        s = jax.lax.dot_general(
            q, k, (((1,), (1,)), ((), ())),
            preferred_element_type=jnp.float32) * sm_scale

        neg = jnp.float32(-1e30)
        if has_prior or causal or mask_keys:
            row = qi * tq + jax.lax.broadcasted_iota(jnp.int32, (tq, tk), 0)
            col = ki * tk + jax.lax.broadcasted_iota(jnp.int32, (tq, tk), 1)

        if has_prior:
            shape_h = prior_ref[0, h]       # per-head scalars from SMEM
            scale_h = prior_ref[1, h]       # exp(log_scale)
            shift_h = prior_ref[2, h]       # exp(loc) - exp(-loc)
            b = (col - row).astype(jnp.float32) - shift_h
            # -(|b| + eps) ** shape * exp(log_scale), via exp(shape * log(.))
            s = s - jnp.exp(shape_h * jnp.log(jnp.abs(b) + prior_eps)) * scale_h

        if has_mask:
            s = s + mask_ref[...].astype(jnp.float32)

        if causal:
            s = jnp.where(col <= row, s, neg)
        if mask_keys:                        # padded key positions
            s = jnp.where(col < seqlen, s, neg)

        m_prev = m_sc[...]
        m_new = jnp.maximum(m_prev, s.max(axis=-1, keepdims=True))
        alpha = jnp.exp(m_prev - m_new)
        p = jnp.exp(s - m_new)
        l_sc[...] = alpha * l_sc[...] + p.sum(axis=-1, keepdims=True)
        # `.type_as(queries)` before the PV matmul, accumulate in f32.
        acc_sc[...] = alpha * acc_sc[...] + jnp.dot(
            p.astype(v.dtype), v, preferred_element_type=jnp.float32)
        m_sc[...] = m_new

    if causal:
        # Skip kv blocks that are entirely above the diagonal.
        pl.when(ki * tk <= qi * tq + (tq - 1))(compute)
        # TODO(synk): drive the kv grid extent per qi via scalar prefetch to
        # also skip the K/V DMAs for fully-masked blocks.
    else:
        compute()

    @pl.when(ki == pl.num_programs(3) - 1)
    def _():
        inv_l = pl.reciprocal(l_sc[...], approx=True)
        o_ref[0, 0] = (acc_sc[...] * inv_l).astype(o_ref.dtype)


def flash_attention(q, k, v, *, sm_scale, causal=False, prior=None, mask=None,
                    prior_eps=1e-5, tq=512, tk=512):
    """q,k,v: (B, H, S, D).  prior: (3, H) f32 or None.  mask: (S, S) or None."""
    B, H, S, D = q.shape
    # Query tiles need sublane (8) alignment; key tiles need lane (128)
    # alignment only when an explicit mask is streamed (it forms a block's
    # last dim).  Sequences are padded to tile multiples, so tiles never fall
    # back to a full-extent (S x S) block for ragged S.
    gq = 8
    gk = 128 if mask is not None else 8
    tq = _round_up(min(tq, S), gq)
    tk = _round_up(min(tk, S), gk)
    S_q = _round_up(S, tq)
    S_k = _round_up(S, tk)

    if S_q > S:
        q = jnp.pad(q, ((0, 0), (0, 0), (0, S_q - S), (0, 0)))
    if S_k > S:
        pad = ((0, 0), (0, 0), (0, S_k - S), (0, 0))
        k = jnp.pad(k, pad)
        v = jnp.pad(v, pad)

    has_prior = prior is not None
    has_mask = mask is not None
    mask_keys = (not causal) and (S_k > S)   # causal already excludes pad keys

    if has_mask:
        mask = jnp.asarray(mask)
        if mask.shape != (S_q, S_k):
            mask = jnp.pad(mask, ((0, S_q - S), (0, S_k - S)))
        mask = mask.astype(jnp.bfloat16)     # halves the mask DMA stream

    grid = (B, H, S_q // tq, S_k // tk)

    in_specs = [
        pl.BlockSpec((1, 1, tq, D), lambda b, h, qi, ki, *_: (b, h, qi, 0)),
        pl.BlockSpec((1, 1, tk, D), lambda b, h, qi, ki, *_: (b, h, ki, 0)),
        pl.BlockSpec((1, 1, tk, D), lambda b, h, qi, ki, *_: (b, h, ki, 0)),
    ]
    inputs = [q, k, v]
    if has_mask:
        in_specs.append(pl.BlockSpec((tq, tk),
                                     lambda b, h, qi, ki, *_: (qi, ki)))
        inputs.append(mask)

    kernel = functools.partial(
        _flash_attn_kernel, sm_scale=sm_scale, seqlen=S, tq=tq, tk=tk,
        causal=causal, has_prior=has_prior, has_mask=has_mask,
        mask_keys=mask_keys, prior_eps=prior_eps)

    flops = 4 * B * H * S_q * S_k * D
    if causal:
        flops //= 2
    transcendentals = B * H * S_q * S_k * (3 if has_prior else 1)
    bytes_accessed = ((2 * S_q + 2 * S_k) * B * H * D * q.dtype.itemsize
                      + (S_q * S_k * 2 if has_mask else 0))

    call_args = ([prior] + inputs) if has_prior else inputs
    out = pl.pallas_call(
        kernel,
        out_shape=jax.ShapeDtypeStruct((B, H, S_q, D), q.dtype),
        grid_spec=pltpu.PrefetchScalarGridSpec(
            num_scalar_prefetch=1 if has_prior else 0,
            grid=grid,
            in_specs=in_specs,
            out_specs=pl.BlockSpec((1, 1, tq, D),
                                   lambda b, h, qi, ki, *_: (b, h, qi, 0)),
            scratch_shapes=[
                pltpu.VMEM((tq, 1), jnp.float32),   # running max
                pltpu.VMEM((tq, 1), jnp.float32),   # running denom
                pltpu.VMEM((tq, D), jnp.float32),   # output accumulator
            ],
        ),
        compiler_params=pltpu.CompilerParams(
            dimension_semantics=("parallel", "parallel", "parallel",
                                 "arbitrary")),
        cost_estimate=pl.CostEstimate(flops=flops,
                                      transcendentals=transcendentals,
                                      bytes_accessed=bytes_accessed),
    )(*call_args)

    if S_q > S:
        out = out[:, :, :S, :]
    return out


# ----------------------------------------------------------------------------
# BayesianAttention forward
# ----------------------------------------------------------------------------
def bayesian_attention(x, wq, wk, wv, wo, *, n_heads, mask=None, causal=False,
                       prior_params=None, prior_eps=1e-5):
    """x: (B, S, dim). Weights stored (in, out) = torch Linear weight.T.

    causal=True applies the standard causal mask in-kernel (fast path, with
    block skipping); otherwise `mask` is an additive (S, S) mask tensor.
    prior_params = (shape, log_scale, loc) each (1, H, 1, 1) enables the
    local-positional-encoding AttentionPrior; None disables it.
    """
    bsz, seqlen, dim = x.shape
    head_dim = wq.shape[1] // n_heads
    sm_scale = 1.0 / math.sqrt(head_dim)
    if causal:
        assert mask is None, "pass either causal=True or an explicit mask"
    # TODO(synk): grouped KV (n_kv_heads < n_heads) — the reference forward
    # itself assumes n_kv_heads == n_heads (it never calls repeat_kv).

    x2d = x.reshape(bsz * seqlen, dim)
    q2d, k2d, v2d = qkv_projection(x2d, wq, wk, wv)     # x read from HBM once

    def to_heads(t):
        return t.reshape(bsz, seqlen, n_heads, head_dim).transpose(0, 2, 1, 3)

    q, k, v = to_heads(q2d), to_heads(k2d), to_heads(v2d)
    # TODO(synk): when head_dim % 128 == 0 the flash kernel could read q/k/v
    # (and write its output) directly in the (B*S, H*D) layout via index_map,
    # eliminating these four XLA transposes.

    prior = None
    if prior_params is not None:
        shape_p, log_scale_p, loc_p = prior_params
        loc_f = jnp.asarray(loc_p, jnp.float32)
        prior = jnp.stack([
            jnp.asarray(shape_p, jnp.float32).reshape(-1),
            jnp.exp(jnp.asarray(log_scale_p, jnp.float32)).reshape(-1),
            (jnp.exp(loc_f) - jnp.exp(-loc_f)).reshape(-1),
        ]).astype(jnp.float32)                          # (3, H), lives in SMEM

    mask2d = None
    if mask is not None:
        # TODO(synk): per-batch masks would need a (B, H, S, S) bias stream.
        mask2d = jnp.asarray(mask).reshape(seqlen, seqlen)

    out = flash_attention(q, k, v, sm_scale=sm_scale, causal=causal,
                          prior=prior, mask=mask2d, prior_eps=prior_eps)
    out = out.transpose(0, 2, 1, 3).reshape(bsz * seqlen, n_heads * head_dim)
    return matmul(out, wo).reshape(bsz, seqlen, dim)


# ----------------------------------------------------------------------------
# smoke test
# ----------------------------------------------------------------------------
if __name__ == "__main__":
    key = jax.random.PRNGKey(0)
    bsz, seqlen, dim, n_heads = 2, 8, 32, 4
    head_dim = dim // n_heads

    kx, kq, kk, kv_, ko = jax.random.split(key, 5)
    wscale = 1.0 / math.sqrt(dim)
    x = jax.random.normal(kx, (bsz, seqlen, dim), jnp.float32)
    wq = jax.random.normal(kq, (dim, n_heads * head_dim), jnp.float32) * wscale
    wk = jax.random.normal(kk, (dim, n_heads * head_dim), jnp.float32) * wscale
    wv = jax.random.normal(kv_, (dim, n_heads * head_dim), jnp.float32) * wscale
    wo = jax.random.normal(ko, (n_heads * head_dim, dim), jnp.float32) * wscale

    # AttentionPrior params: shape_init=1, scale_init='slope', loc_init=0.
    shape_p = jnp.ones((1, n_heads, 1, 1), jnp.float32)
    log_scale_p = jnp.log(jnp.asarray(get_slopes(n_heads), jnp.float32)
                          ).reshape(1, n_heads, 1, 1)
    loc_p = jnp.zeros((1, n_heads, 1, 1), jnp.float32)

    causal_ok = jnp.tril(jnp.ones((seqlen, seqlen), bool))
    causal_mask = jnp.where(causal_ok, 0.0, -1e30).astype(jnp.float32)

    # ---- pure-JAX reference mirroring the PyTorch forward ----
    def reference(mask, with_prior):
        qr = (x.reshape(-1, dim) @ wq).reshape(bsz, seqlen, n_heads, head_dim).transpose(0, 2, 1, 3)
        kr = (x.reshape(-1, dim) @ wk).reshape(bsz, seqlen, n_heads, head_dim).transpose(0, 2, 1, 3)
        vr = (x.reshape(-1, dim) @ wv).reshape(bsz, seqlen, n_heads, head_dim).transpose(0, 2, 1, 3)
        scores = jnp.einsum("bhqd,bhkd->bhqk", qr, kr) / math.sqrt(head_dim)
        if with_prior:
            scores = scores + attention_prior(seqlen, shape_p, log_scale_p, loc_p)
        scores = scores + mask
        p = jax.nn.softmax(scores.astype(jnp.float32), axis=-1).astype(qr.dtype)
        o = jnp.einsum("bhqk,bhkd->bhqd", p, vr)
        return o.transpose(0, 2, 1, 3).reshape(bsz, seqlen, -1) @ wo

    # Case A: causal fast path (in-kernel mask + block skipping) with prior.
    out_a = bayesian_attention(x, wq, wk, wv, wo, n_heads=n_heads, causal=True,
                               prior_params=(shape_p, log_scale_p, loc_p))
    out_a = jax.block_until_ready(out_a)
    ref_a = reference(causal_mask, with_prior=True)
    assert out_a.shape == x.shape, (out_a.shape, x.shape)
    err_a = float(jnp.max(jnp.abs(out_a - ref_a)))
    assert jnp.allclose(out_a, ref_a, atol=2e-2, rtol=2e-2), f"case A err {err_a}"

    # Case B: explicit additive mask streamed into the kernel (no prior).
    # Exercises the bf16 mask stream and the key-padding path.
    out_b = bayesian_attention(x, wq, wk, wv, wo, n_heads=n_heads,
                               mask=causal_mask)
    out_b = jax.block_until_ready(out_b)
    ref_b = reference(causal_mask, with_prior=False)
    err_b = float(jnp.max(jnp.abs(out_b - ref_b)))
    assert jnp.allclose(out_b, ref_b, atol=2e-2, rtol=2e-2), f"case B err {err_b}"

    print("KERNEL_OK")
</pallas_src>

<mosaic_0001>
module attributes {stable_mosaic.version = 11 : i64} {
  func.func @_qkv_proj_kernel(%arg0: i32, %arg1: i32, %arg2: i32, %arg3: memref<16x32xf32, #tpu.memory_space<vmem>>, %arg4: memref<32x32xf32, #tpu.memory_space<vmem>>, %arg5: memref<32x32xf32, #tpu.memory_space<vmem>>, %arg6: memref<32x32xf32, #tpu.memory_space<vmem>>, %arg7: memref<16x32xf32, #tpu.memory_space<vmem>>, %arg8: memref<16x32xf32, #tpu.memory_space<vmem>>, %arg9: memref<16x32xf32, #tpu.memory_space<vmem>>, %arg10: memref<16x32xf32, #tpu.memory_space<vmem>>, %arg11: memref<16x32xf32, #tpu.memory_space<vmem>>, %arg12: memref<16x32xf32, #tpu.memory_space<vmem>>) attributes {dimension_semantics = [#tpu.dimension_semantics<parallel>, #tpu.dimension_semantics<parallel>, #tpu.dimension_semantics<arbitrary>], iteration_bounds = array<i64: 1, 1, 1>, scalar_prefetch = 0 : i64, scratch_operands = 3 : i64, tpu.core_type = #tpu.core_type<tc>, window_params = [{transform_indices = @transform_0, window_bounds = array<i64: 16, 32>}, {transform_indices = @transform_1, window_bounds = array<i64: 32, 32>}, {transform_indices = @transform_2, window_bounds = array<i64: 32, 32>}, {transform_indices = @transform_3, window_bounds = array<i64: 32, 32>}, {transform_indices = @transform_4, window_bounds = array<i64: 16, 32>}, {transform_indices = @transform_5, window_bounds = array<i64: 16, 32>}, {transform_indices = @transform_6, window_bounds = array<i64: 16, 32>}]} {
    %c0_i32 = arith.constant 0 : i32
    %0 = arith.cmpi eq, %arg2, %c0_i32 : i32
    %1 = arith.extui %0 : i1 to i32
    %c0_i32_0 = arith.constant 0 : i32
    %2 = arith.cmpi ne, %1, %c0_i32_0 : i32
    scf.if %2 {
      %cst_24 = arith.constant 0.000000e+00 : f32
      %22 = vector.broadcast %cst_24 : f32 to vector<16x32xf32>
      %c0_25 = arith.constant 0 : index
      %c0_26 = arith.constant 0 : index
      %23 = vector.load %arg10[%c0_25, %c0_26] : memref<16x32xf32, #tpu.memory_space<vmem>>, vector<16x32xf32>
      tpu.vector_store %arg10[%c0_25, %c0_26], %22 {strides = array<i32>} : memref<16x32xf32, #tpu.memory_space<vmem>>, vector<16x32xf32>,
      %cst_27 = arith.constant 0.000000e+00 : f32
      %24 = vector.broadcast %cst_27 : f32 to vector<16x32xf32>
      %c0_28 = arith.constant 0 : index
      %c0_29 = arith.constant 0 : index
      %25 = vector.load %arg11[%c0_28, %c0_29] : memref<16x32xf32, #tpu.memory_space<vmem>>, vector<16x32xf32>
      tpu.vector_store %arg11[%c0_28, %c0_29], %24 {strides = array<i32>} : memref<16x32xf32, #tpu.memory_space<vmem>>, vector<16x32xf32>,
      %cst_30 = arith.constant 0.000000e+00 : f32
      %26 = vector.broadcast %cst_30 : f32 to vector<16x32xf32>
      %c0_31 = arith.constant 0 : index
      %c0_32 = arith.constant 0 : index
      %27 = vector.load %arg12[%c0_31, %c0_32] : memref<16x32xf32, #tpu.memory_space<vmem>>, vector<16x32xf32>
      tpu.vector_store %arg12[%c0_31, %c0_32], %26 {strides = array<i32>} : memref<16x32xf32, #tpu.memory_space<vmem>>, vector<16x32xf32>,
    } else {
    }
    %c0 = arith.constant 0 : index
    %c0_1 = arith.constant 0 : index
    %3 = vector.load %arg3[%c0, %c0_1] : memref<16x32xf32, #tpu.memory_space<vmem>>, vector<16x32xf32>
    %c0_2 = arith.constant 0 : index
    %c0_3 = arith.constant 0 : index
    %4 = vector.load %arg10[%c0_2, %c0_3] : memref<16x32xf32, #tpu.memory_space<vmem>>, vector<16x32xf32>
    %c0_4 = arith.constant 0 : index
    %c0_5 = arith.constant 0 : index
    %5 = vector.load %arg4[%c0_4, %c0_5] : memref<32x32xf32, #tpu.memory_space<vmem>>, vector<32x32xf32>
    %cst = arith.constant dense<0.000000e+00> : vector<16x32xf32>
    %6 = tpu.matmul %3, %5, %cst {dimension_numbers = #tpu.dot_dimension_numbers<[1], [0], [0], [1], [0, 0, 1, 1], [], []>} : vector<16x32xf32>, vector<32x32xf32>, vector<16x32xf32> -> vector<16x32xf32>
    %7 = arith.addf %4, %6 : vector<16x32xf32>
    %c0_6 = arith.constant 0 : index
    %c0_7 = arith.constant 0 : index
    %8 = vector.load %arg10[%c0_6, %c0_7] : memref<16x32xf32, #tpu.memory_space<vmem>>, vector<16x32xf32>
    tpu.vector_store %arg10[%c0_6, %c0_7], %7 {strides = array<i32>} : memref<16x32xf32, #tpu.memory_space<vmem>>, vector<16x32xf32>,
    %c0_8 = arith.constant 0 : index
    %c0_9 = arith.constant 0 : index
    %9 = vector.load %arg11[%c0_8, %c0_9] : memref<16x32xf32, #tpu.memory_space<vmem>>, vector<16x32xf32>
    %c0_10 = arith.constant 0 : index
    %c0_11 = arith.constant 0 : index
    %10 = vector.load %arg5[%c0_10, %c0_11] : memref<32x32xf32, #tpu.memory_space<vmem>>, vector<32x32xf32>
    %cst_12 = arith.constant dense<0.000000e+00> : vector<16x32xf32>
    %11 = tpu.matmul %3, %10, %cst_12 {dimension_numbers = #tpu.dot_dimension_numbers<[1], [0], [0], [1], [0, 0, 1, 1], [], []>} : vector<16x32xf32>, vector<32x32xf32>, vector<16x32xf32> -> vector<16x32xf32>
    %12 = arith.addf %9, %11 : vector<16x32xf32>
    %c0_13 = arith.constant 0 : index
    %c0_14 = arith.constant 0 : index
    %13 = vector.load %arg11[%c0_13, %c0_14] : memref<16x32xf32, #tpu.memory_space<vmem>>, vector<16x32xf32>
    tpu.vector_store %arg11[%c0_13, %c0_14], %12 {strides = array<i32>} : memref<16x32xf32, #tpu.memory_space<vmem>>, vector<16x32xf32>,
    %c0_15 = arith.constant 0 : index
    %c0_16 = arith.constant 0 : index
    %14 = vector.load %arg12[%c0_15, %c0_16] : memref<16x32xf32, #tpu.memory_space<vmem>>, vector<16x32xf32>
    %c0_17 = arith.constant 0 : index
    %c0_18 = arith.constant 0 : index
    %15 = vector.load %arg6[%c0_17, %c0_18] : memref<32x32xf32, #tpu.memory_space<vmem>>, vector<32x32xf32>
    %cst_19 = arith.constant dense<0.000000e+00> : vector<16x32xf32>
    %16 = tpu.matmul %3, %15, %cst_19 {dimension_numbers = #tpu.dot_dimension_numbers<[1], [0], [0], [1], [0, 0, 1, 1], [], []>} : vector<16x32xf32>, vector<32x32xf32>, vector<16x32xf32> -> vector<16x32xf32>
    %17 = arith.addf %14, %16 : vector<16x32xf32>
    %c0_20 = arith.constant 0 : index
    %c0_21 = arith.constant 0 : index
    %18 = vector.load %arg12[%c0_20, %c0_21] : memref<16x32xf32, #tpu.memory_space<vmem>>, vector<16x32xf32>
    tpu.vector_store %arg12[%c0_20, %c0_21], %17 {strides = array<i32>} : memref<16x32xf32, #tpu.memory_space<vmem>>, vector<16x32xf32>,
    %c0_i32_22 = arith.constant 0 : i32
    %19 = arith.cmpi eq, %arg2, %c0_i32_22 : i32
    %20 = arith.extui %19 : i1 to i32
    %c0_i32_23 = arith.constant 0 : i32
    %21 = arith.cmpi ne, %20, %c0_i32_23 : i32
    scf.if %21 {
      %c0_24 = arith.constant 0 : index
      %c0_25 = arith.constant 0 : index
      %22 = vector.load %arg10[%c0_24, %c0_25] : memref<16x32xf32, #tpu.memory_space<vmem>>, vector<16x32xf32>
      %c0_26 = arith.constant 0 : index
      %c0_27 = arith.constant 0 : index
      %23 = vector.load %arg7[%c0_26, %c0_27] : memref<16x32xf32, #tpu.memory_space<vmem>>, vector<16x32xf32>
      tpu.vector_store %arg7[%c0_26, %c0_27], %22 {strides = array<i32>} : memref<16x32xf32, #tpu.memory_space<vmem>>, vector<16x32xf32>,
      %c0_28 = arith.constant 0 : index
      %c0_29 = arith.constant 0 : index
      %24 = vector.load %arg11[%c0_28, %c0_29] : memref<16x32xf32, #tpu.memory_space<vmem>>, vector<16x32xf32>
      %c0_30 = arith.constant 0 : index
      %c0_31 = arith.constant 0 : index
      %25 = vector.load %arg8[%c0_30, %c0_31] : memref<16x32xf32, #tpu.memory_space<vmem>>, vector<16x32xf32>
      tpu.vector_store %arg8[%c0_30, %c0_31], %24 {strides = array<i32>} : memref<16x32xf32, #tpu.memory_space<vmem>>, vector<16x32xf32>,
      %c0_32 = arith.constant 0 : index
      %c0_33 = arith.constant 0 : index
      %26 = vector.load %arg12[%c0_32, %c0_33] : memref<16x32xf32, #tpu.memory_space<vmem>>, vector<16x32xf32>
      %c0_34 = arith.constant 0 : index
      %c0_35 = arith.constant 0 : index
      %27 = vector.load %arg9[%c0_34, %c0_35] : memref<16x32xf32, #tpu.memory_space<vmem>>, vector<16x32xf32>
      tpu.vector_store %arg9[%c0_34, %c0_35], %26 {strides = array<i32>} : memref<16x32xf32, #tpu.memory_space<vmem>>, vector<16x32xf32>,
    } else {
    }
    return
  }
  func.func @transform_0(%arg0: i32, %arg1: i32, %arg2: i32) -> (i32, i32) {
    %c0_i32 = arith.constant 0 : i32
    return %arg0, %arg2 : i32, i32
  }
  func.func @transform_1(%arg0: i32, %arg1: i32, %arg2: i32) -> (i32, i32) {
    %c0_i32 = arith.constant 0 : i32
    return %arg2, %arg1 : i32, i32
  }
  func.func @transform_2(%arg0: i32, %arg1: i32, %arg2: i32) -> (i32, i32) {
    %c0_i32 = arith.constant 0 : i32
    return %arg2, %arg1 : i32, i32
  }
  func.func @transform_3(%arg0: i32, %arg1: i32, %arg2: i32) -> (i32, i32) {
    %c0_i32 = arith.constant 0 : i32
    return %arg2, %arg1 : i32, i32
  }
  func.func @transform_4(%arg0: i32, %arg1: i32, %arg2: i32) -> (i32, i32) {
    %c0_i32 = arith.constant 0 : i32
    return %arg0, %arg1 : i32, i32
  }
  func.func @transform_5(%arg0: i32, %arg1: i32, %arg2: i32) -> (i32, i32) {
    %c0_i32 = arith.constant 0 : i32
    return %arg0, %arg1 : i32, i32
  }
  func.func @transform_6(%arg0: i32, %arg1: i32, %arg2: i32) -> (i32, i32) {
    %c0_i32 = arith.constant 0 : i32
    return %arg0, %arg1 : i32, i32
  }
}

</mosaic_0001>

<llo_original>
// kernel: tpu_custom_call.1
$region0: #{tpu_custom_call.1}
  #allocation0 [shape = 'u32[]', space=smem, size = 0x4, offset = 0x4, fixed_abs, tag = 'smem constant byte address 0x4 - core index']
  #allocation1 [shape = 'u32[144,128]{1,0:T(1,128)}', space=vmem, size = 0x12000, scoped, tag = 'internal scratch']
  #allocation2 [shape = 'f32[16,32]{1,0:T(8,128)}', space=vmem, size = 0x2000, scoped, tag = 'scratch operand']
  #allocation3 [shape = 'f32[16,32]{1,0:T(8,128)}', space=vmem, size = 0x2000, scoped, tag = 'scratch operand']
  #allocation4 [shape = 'f32[16,32]{1,0:T(8,128)}', space=vmem, size = 0x2000, scoped, tag = 'scratch operand']
  %s0 = inlined_call_operand.hbm [shape: f32[16,32], index: 0, kind: input, shape index: {}]
  %s1 = inlined_call_operand.hbm [shape: f32[32,32], index: 1, kind: input, shape index: {}]
  %s2 = inlined_call_operand.hbm [shape: f32[32,32], index: 2, kind: input, shape index: {}]
  %s3 = inlined_call_operand.hbm [shape: f32[32,32], index: 3, kind: input, shape index: {}]
  %s4 = inlined_call_operand.hbm [shape: f32[16,32], index: 4, kind: output, shape index: {0}]
  %s5 = inlined_call_operand.hbm [shape: f32[16,32], index: 5, kind: output, shape index: {1}]
  %s6 = inlined_call_operand.hbm [shape: f32[16,32], index: 6, kind: output, shape index: {2}]
  %7 = xla_tuple %s4, %s5, %s6
  %s8 = sld [smem:[#allocation0]]
  $region66: #{tpu_custom_call.1} parent=0
    _
  %s10 = ssub.s32 1, %s8
  %s11 = scalar_select 0, %s10, %s8
  $region1: #{tpu_custom_call.1} parent=0
    #allocation5 [shape = 'u8[8192]{0}', space=vmem, size = 0x2000, scoped, tag = 'input window, operand 0, single buffered']
    #allocation6 [shape = 's32[1]{0}', space=sflag, size = 0x4, scoped, tag = 'scoped memory for tpu_custom_call.1']
    #allocation7 [shape = 's32[1]{0}', space=sflag, size = 0x4, scoped, tag = 'scoped memory for tpu_custom_call.1']
    #allocation8 [shape = 'u8[16384]{0}', space=vmem, size = 0x4000, scoped, tag = 'input window, operand 1, single buffered']
    #allocation9 [shape = 's32[1]{0}', space=sflag, size = 0x4, scoped, tag = 'scoped memory for tpu_custom_call.1']
    #allocation10 [shape = 'u8[16384]{0}', space=vmem, size = 0x4000, scoped, tag = 'input window, operand 2, single buffered']
    #allocation11 [shape = 'u8[16384]{0}', space=vmem, size = 0x4000, scoped, tag = 'input window, operand 3, single buffered']
    #allocation12 [shape = 's32[1]{0}', space=sflag, size = 0x4, scoped, tag = 'scoped memory for tpu_custom_call.1']
    #allocation13 [shape = 'u8[8192]{0}', space=vmem, size = 0x2000, scoped, tag = 'output window, operand 0, single buffered']
    #allocation14 [shape = 'u8[8192]{0}', space=vmem, size = 0x2000, scoped, tag = 'output window, operand 1, single buffered']
    #allocation15 [shape = 's32[1]{0}', space=sflag, size = 0x4, scoped, tag = 'scoped memory for tpu_custom_call.1']
    #allocation16 [shape = 'u8[8192]{0}', space=vmem, size = 0x2000, scoped, tag = 'output window, operand 2, single buffered']
    %12 = vsyncpa [#allocation6], 0
    %13 = vsyncpa [#allocation9], 0
    %14 = vsyncpa [#allocation12], 0
    %15 = vsyncpa [#allocation7], 0
    %16 = vsyncpa [#allocation15], 0
    // Predicated region
    $region2: #{tpu_custom_call.1} parent=1 // pred_check
      _
    $region3: #{tpu_custom_call.1} parent=1 // pred_check_branch
      %18 = sbr.rel (0) target = $region5
    $region4: #{tpu_custom_call.1} parent=1 // pred_region
      %s20 = ssub.s32 256, 256
      %21 = vsyncadd [#allocation6], %s20
      %s22 = sshll.u32 [#allocation5], 4
      %s23 = int_to_ptr.vmem [resolvable:$true] %s22
      %28 = dma.hbm_to_vmem [thread:$0]  %s0, 256, %s23, [#allocation6], 128, 128, 8
    $region5: #{tpu_custom_call.1} parent=1 // pred_fallthru
      _
    // Predicated region
    $region6: #{tpu_custom_call.1} parent=1 // pred_check
      _
    $region7: #{tpu_custom_call.1} parent=1 // pred_check_branch
      %30 = sbr.rel (0) target = $region9
    $region8: #{tpu_custom_call.1} parent=1 // pred_region
      %s32 = ssub.s32 512, 512
      %33 = vsyncadd [#allocation9], %s32
      %s34 = sshll.u32 [#allocation8], 4
      %s35 = int_to_ptr.vmem [resolvable:$true] %s34
      %40 = dma.hbm_to_vmem [thread:$0]  %s1, 512, %s35, [#allocation9], 128, 128, 8
    $region9: #{tpu_custom_call.1} parent=1 // pred_fallthru
      _
    // Predicated region
    $region10: #{tpu_custom_call.1} parent=1 // pred_check
      _
    $region11: #{tpu_custom_call.1} parent=1 // pred_check_branch
      %42 = sbr.rel (0) target = $region13
    $region12: #{tpu_custom_call.1} parent=1 // pred_region
      %s44 = ssub.s32 512, 512
      %45 = vsyncadd [#allocation9], %s44
      %s46 = sshll.u32 [#allocation10], 4
      %s47 = int_to_ptr.vmem [resolvable:$true] %s46
      %52 = dma.hbm_to_vmem [thread:$0]  %s2, 512, %s47, [#allocation9], 128, 128, 8
    $region13: #{tpu_custom_call.1} parent=1 // pred_fallthru
      _
    // Predicated region
    $region14: #{tpu_custom_call.1} parent=1 // pred_check
      _
    $region15: #{tpu_custom_call.1} parent=1 // pred_check_branch
      %54 = sbr.rel (0) target = $region17
    $region16: #{tpu_custom_call.1} parent=1 // pred_region
      %s56 = ssub.s32 512, 512
      %57 = vsyncadd [#allocation12], %s56
      %s58 = sshll.u32 [#allocation11], 4
      %s59 = int_to_ptr.vmem [resolvable:$true] %s58
      %64 = dma.hbm_to_vmem [thread:$0]  %s3, 512, %s59, [#allocation12], 128, 128, 8
    $region17: #{tpu_custom_call.1} parent=1 // pred_fallthru
      _
    // Predicated region
    $region18: #{tpu_custom_call.1} parent=1 // pred_check
      _
    $region19: #{tpu_custom_call.1} parent=1 // pred_check_branch
      %66 = sbr.rel (0) target = $region21
    $region20: #{tpu_custom_call.1} parent=1 // pred_region
      %67 = dma.done [#allocation6], 256
    $region21: #{tpu_custom_call.1} parent=1 // pred_fallthru
      _
    // Predicated region
    $region22: #{tpu_custom_call.1} parent=1 // pred_check
      _
    $region23: #{tpu_custom_call.1} parent=1 // pred_check_branch
      %69 = sbr.rel (0) target = $region25
    $region24: #{tpu_custom_call.1} parent=1 // pred_region
      %70 = dma.done [#allocation9], 512
    $region25: #{tpu_custom_call.1} parent=1 // pred_fallthru
      _
    // Predicated region
    $region26: #{tpu_custom_call.1} parent=1 // pred_check
      _
    $region27: #{tpu_custom_call.1} parent=1 // pred_check_branch
      %72 = sbr.rel (0) target = $region29
    $region28: #{tpu_custom_call.1} parent=1 // pred_region
      %73 = dma.done [#allocation9], 512
    $region29: #{tpu_custom_call.1} parent=1 // pred_fallthru
      _
    // Predicated region
    $region30: #{tpu_custom_call.1} parent=1 // pred_check
      _
    $region31: #{tpu_custom_call.1} parent=1 // pred_check_branch
      %75 = sbr.rel (0) target = $region33
    $region32: #{tpu_custom_call.1} parent=1 // pred_region
      %76 = dma.done [#allocation12], 512
    $region33: #{tpu_custom_call.1} parent=1 // pred_fallthru
      _
    %p77 = scmp.eq.s32.totalorder 0, 0
    // Predicated region
    $region34: #{tpu_custom_call.1} parent=1 // pred_check
      %p78 = pneg %p77
    $region35: #{tpu_custom_call.1} parent=1 // pred_check_branch
      %80 = sbr.rel (%p78) target = $region37
    $region36: #{tpu_custom_call.1} parent=1 // pred_region
      %vm81 = vcmask 261120
      %82 = vst.msk [vmem:[#allocation2] sm:$0xff] %vm81, 0.0
      %83 = vst.msk [vmem:[#allocation2 + $0x8] sm:$0xff] %vm81, 0.0
      %84 = vst.msk [vmem:[#allocation3] sm:$0xff] %vm81, 0.0
      %85 = vst.msk [vmem:[#allocation3 + $0x8] sm:$0xff] %vm81, 0.0
      %86 = vst.msk [vmem:[#allocation4] sm:$0xff] %vm81, 0.0
      %87 = vst.msk [vmem:[#allocation4 + $0x8] sm:$0xff] %vm81, 0.0
    $region37: #{tpu_custom_call.1} parent=1 // pred_fallthru
      _
    %v88 = vld [vmem:[#allocation5] sm:$0xff]
    %v89 = vld [vmem:[#allocation5 + $0x8] sm:$0xff]
    %v90 = vld [vmem:[#allocation2] sm:$0xff]
    %v91 = vld [vmem:[#allocation2 + $0x8] sm:$0xff]
    %v92 = vld [vmem:[#allocation8] sm:$0xff]
    %v93 = vld [vmem:[#allocation8 + $0x8] sm:$0xff]
    %v94 = vld [vmem:[#allocation8 + $0x10] sm:$0xff]
    %v95 = vld [vmem:[#allocation8 + $0x18] sm:$0xff]
    %vm96 = vcmask 261120
    %v98 = vsel %vm96, %v88, 0
    %v101 = vsel %vm96, %v89, 0
    %103 = vmatprep.subr.mxu0 0.0
    %104 = vmatpush1.msra.mxu0 %v92
    %105 = vmatprep.subr.mxu0 0.0
    %106 = vmatpush1.msra.mxu0 %v93
    %107 = vmatprep.subr.mxu0 0.0
    %108 = vmatpush1.msra.mxu0 %v94
    %109 = vmatprep.subr.mxu0 0.0
    %110 = vmatpush1.msra.mxu0 %v95
    %111 = vmatprep.subr.mxu0 0.0
    %112 = vmatpush1.msra.mxu0 0.0
    %113 = vmatprep.subr.mxu0 0.0
    %114 = vmatpush1.msra.mxu0 0.0
    %115 = vmatprep.subr.mxu0 0.0
    %116 = vmatpush1.msra.mxu0 0.0
    %117 = vmatprep.subr.mxu0 0.0
    %118 = vmatpush1.msra.mxu0 0.0
    %119 = vmatprep.subr.mxu0 0.0
    %120 = vmatpush1.msra.mxu0 0.0
    %121 = vmatprep.subr.mxu0 0.0
    %122 = vmatpush1.msra.mxu0 0.0
    %123 = vmatprep.subr.mxu0 0.0
    %124 = vmatpush1.msra.mxu0 0.0
    %125 = vmatprep.subr.mxu0 0.0
    %126 = vmatpush1.msra.mxu0 0.0
    %127 = vmatprep.subr.mxu0 0.0
    %128 = vmatpush1.msra.mxu0 0.0
    %129 = vmatprep.subr.mxu0 0.0
    %130 = vmatpush1.msra.mxu0 0.0
    %131 = vmatprep.subr.mxu0 0.0
    %132 = vmatpush1.msra.mxu0 0.0
    %133 = vmatprep.subr.mxu0 0.0
    %134 = vmatpush1.msra.mxu0 0.0
    %135 = vmatprep.subr.mxu0 0.0
    %136 = vmatpush1.msra.mxu0 0.0
    %137 = vmatprep.subr.mxu0 0.0
    %138 = vmatpush1.msra.mxu0 0.0
    %139 = vmatprep.subr.mxu0 0.0
    %140 = vmatpush1.msra.mxu0 0.0
    %141 = vmatprep.subr.mxu0 0.0
    %142 = vmatpush1.msra.mxu0 0.0
    %143 = vmatprep.subr.mxu0 0.0
    %144 = vmatpush1.msra.mxu0 0.0
    %145 = vmatprep.subr.mxu0 0.0
    %146 = vmatpush1.msra.mxu0 0.0
    %147 = vmatprep.subr.mxu0 0.0
    %148 = vmatpush1.msra.mxu0 0.0
    %149 = vmatprep.subr.mxu0 0.0
    %150 = vmatpush1.msra.mxu0 0.0
    %151 = vmatprep.subr.mxu0 0.0
    %152 = vmatpush1.msra.mxu0 0.0
    %153 = vmatprep.subr.mxu0 0.0
    %154 = vmatpush1.msra.mxu0 0.0
    %155 = vmatprep.subr.mxu0 0.0
    %156 = vmatpush1.msra.mxu0 0.0
    %157 = vmatprep.subr.mxu0 0.0
    %158 = vmatpush1.msra.mxu0 0.0
    %159 = vmatprep.subr.mxu0 0.0
    %160 = vmatpush1.msra.mxu0 0.0
    %161 = vmatprep.subr.mxu0 0.0
    %162 = vmatpush1.msra.mxu0 0.0
    %163 = vmatprep.subr.mxu0 0.0
    %164 = vmatpush1.msra.mxu0 0.0
    %165 = vmatprep.subr.mxu0 0.0
    %166 = vmatpush1.msra.mxu0 0.0
    %167 = vmatprep.mubr.f32.mxu0 0.0
    %168 = vmatmul.mubr.f32.gmra.mrb[0].mxu0 %v98
    %v169 = vpop.f32.mrb[0].mxu0
    %v170 = vadd.f32 0.0, %v169
    %v171 = vpop.f32.mrb[0].mxu0
    %172 = vmatprep.mubr.f32.mxu0 0.0
    %173 = vmatmul.mubr.f32.gmra.mrb[0].mxu0 %v101
    %v174 = vpop.f32.mrb[0].mxu0
    %v175 = vadd.f32 0.0, %v174
    %v176 = vpop.f32.mrb[0].mxu0
    %177 = vdwg.mxu0
    %v178 = vadd.f32 %v90, %v170
    %v179 = vadd.f32 %v91, %v175
    %180 = vst.msk [vmem:[#allocation2] sm:$0xff] %vm96, %v178
    %181 = vst.msk [vmem:[#allocation2 + $0x8] sm:$0xff] %vm96, %v179
    %v182 = vld [vmem:[#allocation3] sm:$0xff]
    %v183 = vld [vmem:[#allocation3 + $0x8] sm:$0xff]
    %v184 = vld [vmem:[#allocation10] sm:$0xff]
    %v185 = vld [vmem:[#allocation10 + $0x8] sm:$0xff]
    %v186 = vld [vmem:[#allocation10 + $0x10] sm:$0xff]
    %v187 = vld [vmem:[#allocation10 + $0x18] sm:$0xff]
    %188 = vmatprep.subr.mxu0 0.0
    %189 = vmatpush1.msra.mxu0 %v184
    %190 = vmatprep.subr.mxu0 0.0
    %191 = vmatpush1.msra.mxu0 %v185
    %192 = vmatprep.subr.mxu0 0.0
    %193 = vmatpush1.msra.mxu0 %v186
    %194 = vmatprep.subr.mxu0 0.0
    %195 = vmatpush1.msra.mxu0 %v187
    %196 = vmatprep.subr.mxu0 0.0
    %197 = vmatpush1.msra.mxu0 0.0
    %198 = vmatprep.subr.mxu0 0.0
    %199 = vmatpush1.msra.mxu0 0.0
    %200 = vmatprep.subr.mxu0 0.0
    %201 = vmatpush1.msra.mxu0 0.0
    %202 = vmatprep.subr.mxu0 0.0
    %203 = vmatpush1.msra.mxu0 0.0
    %204 = vmatprep.subr.mxu0 0.0
    %205 = vmatpush1.msra.mxu0 0.0
    %206 = vmatprep.subr.mxu0 0.0
    %207 = vmatpush1.msra.mxu0 0.0
    %208 = vmatprep.subr.mxu0 0.0
    %209 = vmatpush1.msra.mxu0 0.0
    %210 = vmatprep.subr.mxu0 0.0
    %211 = vmatpush1.msra.mxu0 0.0
    %212 = vmatprep.subr.mxu0 0.0
    %213 = vmatpush1.msra.mxu0 0.0
    %214 = vmatprep.subr.mxu0 0.0
    %215 = vmatpush1.msra.mxu0 0.0
    %216 = vmatprep.subr.mxu0 0.0
    %217 = vmatpush1.msra.mxu0 0.0
    %218 = vmatprep.subr.mxu0 0.0
    %219 = vmatpush1.msra.mxu0 0.0
    %220 = vmatprep.subr.mxu0 0.0
    %221 = vmatpush1.msra.mxu0 0.0
    %222 = vmatprep.subr.mxu0 0.0
    %223 = vmatpush1.msra.mxu0 0.0
    %224 = vmatprep.subr.mxu0 0.0
    %225 = vmatpush1.msra.mxu0 0.0
    %226 = vmatprep.subr.mxu0 0.0
    %227 = vmatpush1.msra.mxu0 0.0
    %228 = vmatprep.subr.mxu0 0.0
    %229 = vmatpush1.msra.mxu0 0.0
    %230 = vmatprep.subr.mxu0 0.0
    %231 = vmatpush1.msra.mxu0 0.0
    %232 = vmatprep.subr.mxu0 0.0
    %233 = vmatpush1.msra.mxu0 0.0
    %234 = vmatprep.subr.mxu0 0.0
    %235 = vmatpush1.msra.mxu0 0.0
    %236 = vmatprep.subr.mxu0 0.0
    %237 = vmatpush1.msra.mxu0 0.0
    %238 = vmatprep.subr.mxu0 0.0
    %239 = vmatpush1.msra.mxu0 0.0
    %240 = vmatprep.subr.mxu0 0.0
    %241 = vmatpush1.msra.mxu0 0.0
    %242 = vmatprep.subr.mxu0 0.0
    %243 = vmatpush1.msra.mxu0 0.0
    %244 = vmatprep.subr.mxu0 0.0
    %245 = vmatpush1.msra.mxu0 0.0
    %246 = vmatprep.subr.mxu0 0.0
    %247 = vmatpush1.msra.mxu0 0.0
    %248 = vmatprep.subr.mxu0 0.0
    %249 = vmatpush1.msra.mxu0 0.0
    %250 = vmatprep.subr.mxu0 0.0
    %251 = vmatpush1.msra.mxu0 0.0
    %252 = vmatprep.mubr.f32.mxu0 0.0
    %253 = vmatmul.mubr.f32.gmra.mrb[0].mxu0 %v98
    %v254 = vpop.f32.mrb[0].mxu0
    %v255 = vadd.f32 0.0, %v254
    %v256 = vpop.f32.mrb[0].mxu0
    %257 = vmatprep.mubr.f32.mxu0 0.0
    %258 = vmatmul.mubr.f32.gmra.mrb[0].mxu0 %v101
    %v259 = vpop.f32.mrb[0].mxu0
    %v260 = vadd.f32 0.0, %v259
    %v261 = vpop.f32.mrb[0].mxu0
    %262 = vdwg.mxu0
    %v263 = vadd.f32 %v182, %v255
    %v264 = vadd.f32 %v183, %v260
    %265 = vst.msk [vmem:[#allocation3] sm:$0xff] %vm96, %v263
    %266 = vst.msk [vmem:[#allocation3 + $0x8] sm:$0xff] %vm96, %v264
    %v267 = vld [vmem:[#allocation4] sm:$0xff]
    %v268 = vld [vmem:[#allocation4 + $0x8] sm:$0xff]
    %v269 = vld [vmem:[#allocation11] sm:$0xff]
    %v270 = vld [vmem:[#allocation11 + $0x8] sm:$0xff]
    %v271 = vld [vmem:[#allocation11 + $0x10] sm:$0xff]
    %v272 = vld [vmem:[#allocation11 + $0x18] sm:$0xff]
    %273 = vmatprep.subr.mxu0 0.0
    %274 = vmatpush1.msra.mxu0 %v269
    %275 = vmatprep.subr.mxu0 0.0
    %276 = vmatpush1.msra.mxu0 %v270
    %277 = vmatprep.subr.mxu0 0.0
    %278 = vmatpush1.msra.mxu0 %v271
    %279 = vmatprep.subr.mxu0 0.0
    %280 = vmatpush1.msra.mxu0 %v272
    %281 = vmatprep.subr.mxu0 0.0
    %282 = vmatpush1.msra.mxu0 0.0
    %283 = vmatprep.subr.mxu0 0.0
    %284 = vmatpush1.msra.mxu0 0.0
    %285 = vmatprep.subr.mxu0 0.0
    %286 = vmatpush1.msra.mxu0 0.0
    %287 = vmatprep.subr.mxu0 0.0
    %288 = vmatpush1.msra.mxu0 0.0
    %289 = vmatprep.subr.mxu0 0.0
    %290 = vmatpush1.msra.mxu0 0.0
    %291 = vmatprep.subr.mxu0 0.0
    %292 = vmatpush1.msra.mxu0 0.0
    %293 = vmatprep.subr.mxu0 0.0
    %294 = vmatpush1.msra.mxu0 0.0
    %295 = vmatprep.subr.mxu0 0.0
    %296 = vmatpush1.msra.mxu0 0.0
    %297 = vmatprep.subr.mxu0 0.0
    %298 = vmatpush1.msra.mxu0 0.0
    %299 = vmatprep.subr.mxu0 0.0
    %300 = vmatpush1.msra.mxu0 0.0
    %301 = vmatprep.subr.mxu0 0.0
    %302 = vmatpush1.msra.mxu0 0.0
    %303 = vmatprep.subr.mxu0 0.0
    %304 = vmatpush1.msra.mxu0 0.0
    %305 = vmatprep.subr.mxu0 0.0
    %306 = vmatpush1.msra.mxu0 0.0
    %307 = vmatprep.subr.mxu0 0.0
    %308 = vmatpush1.msra.mxu0 0.0
    %309 = vmatprep.subr.mxu0 0.0
    %310 = vmatpush1.msra.mxu0 0.0
    %311 = vmatprep.subr.mxu0 0.0
    %312 = vmatpush1.msra.mxu0 0.0
    %313 = vmatprep.subr.mxu0 0.0
    %314 = vmatpush1.msra.mxu0 0.0
    %315 = vmatprep.subr.mxu0 0.0
    %316 = vmatpush1.msra.mxu0 0.0
    %317 = vmatprep.subr.mxu0 0.0
    %318 = vmatpush1.msra.mxu0 0.0
    %319 = vmatprep.subr.mxu0 0.0
    %320 = vmatpush1.msra.mxu0 0.0
    %321 = vmatprep.subr.mxu0 0.0
    %322 = vmatpush1.msra.mxu0 0.0
    %323 = vmatprep.subr.mxu0 0.0
    %324 = vmatpush1.msra.mxu0 0.0
    %325 = vmatprep.subr.mxu0 0.0
    %326 = vmatpush1.msra.mxu0 0.0
    %327 = vmatprep.subr.mxu0 0.0
    %328 = vmatpush1.msra.mxu0 0.0
    %329 = vmatprep.subr.mxu0 0.0
    %330 = vmatpush1.msra.mxu0 0.0
    %331 = vmatprep.subr.mxu0 0.0
    %332 = vmatpush1.msra.mxu0 0.0
    %333 = vmatprep.subr.mxu0 0.0
    %334 = vmatpush1.msra.mxu0 0.0
    %335 = vmatprep.subr.mxu0 0.0
    %336 = vmatpush1.msra.mxu0 0.0
    %337 = vmatprep.mubr.f32.mxu0 0.0
    %338 = vmatmul.mubr.f32.gmra.mrb[0].mxu0 %v98
    %v339 = vpop.f32.mrb[0].mxu0
    %v340 = vadd.f32 0.0, %v339
    %v341 = vpop.f32.mrb[0].mxu0
    %342 = vmatprep.mubr.f32.mxu0 0.0
    %343 = vmatmul.mubr.f32.gmra.mrb[0].mxu0 %v101
    %v344 = vpop.f32.mrb[0].mxu0
    %v345 = vadd.f32 0.0, %v344
    %v346 = vpop.f32.mrb[0].mxu0
    %347 = vdwg.mxu0
    %v348 = vadd.f32 %v267, %v340
    %v349 = vadd.f32 %v268, %v345
    %350 = vst.msk [vmem:[#allocation4] sm:$0xff] %vm96, %v348
    %351 = vst.msk [vmem:[#allocation4 + $0x8] sm:$0xff] %vm96, %v349
    // Predicated region
    $region38: #{tpu_custom_call.1} parent=1 // pred_check
      %p352 = pneg %p77
    $region39: #{tpu_custom_call.1} parent=1 // pred_check_branch
      %354 = sbr.rel (%p352) target = $region41
    $region40: #{tpu_custom_call.1} parent=1 // pred_region
      %v355 = vld [vmem:[#allocation2] sm:$0xff]
      %v356 = vld [vmem:[#allocation2 + $0x8] sm:$0xff]
      %357 = vst.msk [vmem:[#allocation13] sm:$0xff] %vm96, %v355
      %358 = vst.msk [vmem:[#allocation13 + $0x8] sm:$0xff] %vm96, %v356
      %v359 = vld [vmem:[#allocation3] sm:$0xff]
      %v360 = vld [vmem:[#allocation3 + $0x8] sm:$0xff]
      %361 = vst.msk [vmem:[#allocation14] sm:$0xff] %vm96, %v359
      %362 = vst.msk [vmem:[#allocation14 + $0x8] sm:$0xff] %vm96, %v360
      %v363 = vld [vmem:[#allocation4] sm:$0xff]
      %v364 = vld [vmem:[#allocation4 + $0x8] sm:$0xff]
      %365 = vst.msk [vmem:[#allocation16] sm:$0xff] %vm96, %v363
      %366 = vst.msk [vmem:[#allocation16 + $0x8] sm:$0xff] %vm96, %v364
    $region41: #{tpu_custom_call.1} parent=1 // pred_fallthru
      _
    // Predicated region
    $region42: #{tpu_custom_call.1} parent=1 // pred_check
      _
    $region43: #{tpu_custom_call.1} parent=1 // pred_check_branch
      %368 = sbr.rel (0) target = $region45
    $region44: #{tpu_custom_call.1} parent=1 // pred_region
      %s370 = ssub.s32 256, 256
      %371 = vsyncadd [#allocation7], %s370
      %s372 = sshll.u32 [#allocation13], 4
      %s373 = int_to_ptr.vmem [resolvable:$true] %s372
      %378 = dma.vmem_to_hbm [thread:$0]  %s373, 256, %s4, [#allocation7], 128, 128, 8
    $region45: #{tpu_custom_call.1} parent=1 // pred_fallthru
      _
    // Predicated region
    $region46: #{tpu_custom_call.1} parent=1 // pred_check
      _
    $region47: #{tpu_custom_call.1} parent=1 // pred_check_branch
      %380 = sbr.rel (0) target = $region49
    $region48: #{tpu_custom_call.1} parent=1 // pred_region
      %s382 = ssub.s32 256, 256
      %383 = vsyncadd [#allocation15], %s382
      %s384 = sshll.u32 [#allocation14], 4
      %s385 = int_to_ptr.vmem [resolvable:$true] %s384
      %390 = dma.vmem_to_hbm [thread:$0]  %s385, 256, %s5, [#allocation15], 128, 128, 8
    $region49: #{tpu_custom_call.1} parent=1 // pred_fallthru
      _
    // Predicated region
    $region50: #{tpu_custom_call.1} parent=1 // pred_check
      _
    $region51: #{tpu_custom_call.1} parent=1 // pred_check_branch
      %392 = sbr.rel (0) target = $region53
    $region52: #{tpu_custom_call.1} parent=1 // pred_region
      %s394 = ssub.s32 256, 256
      %395 = vsyncadd [#allocation15], %s394
      %s396 = sshll.u32 [#allocation16], 4
      %s397 = int_to_ptr.vmem [resolvable:$true] %s396
      %402 = dma.vmem_to_hbm [thread:$0]  %s397, 256, %s6, [#allocation15], 128, 128, 8
    $region53: #{tpu_custom_call.1} parent=1 // pred_fallthru
      _
    // Predicated region
    $region54: #{tpu_custom_call.1} parent=1 // pred_check
      _
    $region55: #{tpu_custom_call.1} parent=1 // pred_check_branch
      %404 = sbr.rel (0) target = $region57
    $region56: #{tpu_custom_call.1} parent=1 // pred_region
      %405 = dma.done [#allocation7], 256
    $region57: #{tpu_custom_call.1} parent=1 // pred_fallthru
      _
    // Predicated region
    $region58: #{tpu_custom_call.1} parent=1 // pred_check
      _
    $region59: #{tpu_custom_call.1} parent=1 // pred_check_branch
      %407 = sbr.rel (0) target = $region61
    $region60: #{tpu_custom_call.1} parent=1 // pred_region
      %408 = dma.done [#allocation15], 256
    $region61: #{tpu_custom_call.1} parent=1 // pred_fallthru
      _
    // Predicated region
    $region62: #{tpu_custom_call.1} parent=1 // pred_check
      _
    $region63: #{tpu_custom_call.1} parent=1 // pred_check_branch
      %410 = sbr.rel (0) target = $region65
    $region64: #{tpu_custom_call.1} parent=1 // pred_region
      %411 = dma.done [#allocation15], 256
    $region65: #{tpu_custom_call.1} parent=1 // pred_fallthru
      _
    %412 = vsyncpa [#allocation6], 1
    %413 = vsyncpa [#allocation9], 1
    %414 = vsyncpa [#allocation12], 1
    %415 = vsyncpa [#allocation7], 1
    %416 = vsyncpa [#allocation15], 1

</llo_original>
